<compile_context>
chip_gen: v6e
topology: v6e:2x2x1
jax: 0.10.0
libtpu: 0.0.40
codegen_flags: <defaults>
</compile_context>

<pallas_src>
import jax
import jax.numpy as jnp
from jax.experimental import pallas as pl
from jax.experimental.pallas import tpu as pltpu

LN_EPS = 1e-5  # torch.nn.LayerNorm default


# ---------------------------------------------------------------------------
# Generation detection / tiling constants
# ---------------------------------------------------------------------------
def _detect_vmem_bytes():
    try:
        return int(pltpu.get_tpu_info().vmem_capacity_bytes)
    except Exception:
        return 128 << 20  # conservative default (v5e/v6e class)


_VMEM_CAP_BYTES = _detect_vmem_bytes()
_IS_V7X = _VMEM_CAP_BYTES <= (64 << 20)       # 64 MiB VMEM, 2 TensorCores

_MM_MAX_ROWS = 512                             # matmul row tile (multiple of 8)
_LN_MAX_ROWS = 512 if _IS_V7X else 1024        # mem-bound standalone LN tile
_RESIDENT_W_BYTES = (4 << 20) if _IS_V7X else (8 << 20)


def _round_up(x, m):
    return ((x + m - 1) // m) * m


def _row_tile(rows, max_tile):
    if not _IS_V7X:
        return rows if rows <= max_tile else max_tile
    # v7x: make sure the "parallel" row axis has >= 4 tiles so both
    # TensorCores get work; tiny inputs stay a single full-extent tile.
    if rows <= 32:
        return rows
    return min(max_tile, _round_up(pl.cdiv(rows, 4), 8))


def _col_tile(cols):
    if cols % 128 != 0:
        return cols                            # full extent when not lane-aligned
    cap = 256 if _IS_V7X else 512
    for t in (512, 256, 128):
        if t <= cap and cols % t == 0:
            return t                           # divides exactly -> no tail waste
    return cols


def _compiler_params(dims_sem, footprint_bytes):
    # footprint_bytes = real double-buffered tile footprint; add headroom for
    # compiler-internal scratch, cap per generation (32 MiB of v7x's 64 MiB
    # physical, 64 MiB on the 128 MiB parts).
    cap = (32 << 20) if _IS_V7X else (64 << 20)
    limit = int(min(max(int(footprint_bytes) + (4 << 20), 16 << 20), cap))
    return pltpu.CompilerParams(dimension_semantics=dims_sem,
                                vmem_limit_bytes=limit)


# ---------------------------------------------------------------------------
# In-kernel LayerNorm helper (f32 statistics, biased variance — matches torch)
# ---------------------------------------------------------------------------
def _ln_f32(x, gamma, beta):
    x = x.astype(jnp.float32)
    mean = jnp.mean(x, axis=-1, keepdims=True)
    centered = x - mean
    var = jnp.mean(centered * centered, axis=-1, keepdims=True)
    return centered * jax.lax.rsqrt(var + LN_EPS) * gamma + beta


# ---------------------------------------------------------------------------
# Kernels
# ---------------------------------------------------------------------------
def _layernorm_kernel(x_ref, g_ref, b_ref, o_ref):
    o_ref[...] = _ln_f32(x_ref[...], g_ref[...], b_ref[...]).astype(o_ref.dtype)


def _fused_ln_linear_resident_kernel(x_ref, g_ref, b_ref, w_ref, bias_ref, o_ref):
    # Whole weight resident in VMEM (constant block index -> DMA'd once).
    ln = _ln_f32(x_ref[...], g_ref[...], b_ref[...])
    acc = jnp.dot(ln.astype(w_ref.dtype), w_ref[...],
                  preferred_element_type=jnp.float32)
    o_ref[...] = (acc + bias_ref[...]).astype(o_ref.dtype)


def _fused_ln2_linear_resident_kernel(xa_ref, xb_ref, g_ref, b_ref, w_ref,
                                      bias_ref, o_ref):
    # fn(a, b) = linear(LN(a)) + linear(LN(b)) = (LN(a)+LN(b)) @ W + 2*bias
    # (bias intentionally counted twice — exactly the wrapped fn's semantics).
    g = g_ref[...]
    b = b_ref[...]
    ln = _ln_f32(xa_ref[...], g, b) + _ln_f32(xb_ref[...], g, b)
    acc = jnp.dot(ln.astype(w_ref.dtype), w_ref[...],
                  preferred_element_type=jnp.float32)
    o_ref[...] = (acc + 2.0 * bias_ref[...]).astype(o_ref.dtype)


def _fused_ln_linear_tiled_kernel(x_ref, g_ref, b_ref, w_ref, bias_ref, o_ref,
                                  ln_sc):
    # Large dout: LN once per row tile (j == 0), cached in bf16 VMEM scratch
    # and reused across every output-column tile.
    @pl.when(pl.program_id(1) == 0)
    def _():
        ln_sc[...] = _ln_f32(x_ref[...], g_ref[...], b_ref[...]).astype(ln_sc.dtype)

    acc = jnp.dot(ln_sc[...], w_ref[...], preferred_element_type=jnp.float32)
    o_ref[...] = (acc + bias_ref[...]).astype(o_ref.dtype)


def _fused_ln2_linear_tiled_kernel(xa_ref, xb_ref, g_ref, b_ref, w_ref,
                                   bias_ref, o_ref, ln_sc):
    @pl.when(pl.program_id(1) == 0)
    def _():
        g = g_ref[...]
        b = b_ref[...]
        ln_sc[...] = (_ln_f32(xa_ref[...], g, b)
                      + _ln_f32(xb_ref[...], g, b)).astype(ln_sc.dtype)

    acc = jnp.dot(ln_sc[...], w_ref[...], preferred_element_type=jnp.float32)
    o_ref[...] = (acc + 2.0 * bias_ref[...]).astype(o_ref.dtype)


def _linear_kernel(x_ref, w_ref, b_ref, o_ref):
    # Cast the already-resident activation tile to the weight dtype (bf16 when
    # fed from PallasLinear) so the MXU runs native bf16, accumulate in f32.
    acc = jnp.dot(x_ref[...].astype(w_ref.dtype), w_ref[...],
                  preferred_element_type=jnp.float32)
    o_ref[...] = (acc + b_ref[...]).astype(o_ref.dtype)


# ---------------------------------------------------------------------------
# Wrappers
# ---------------------------------------------------------------------------
def layernorm(x, gamma, beta):
    """Standalone Pallas LayerNorm over the last dim (generic-fn fallback)."""
    orig_shape = x.shape
    dim = orig_shape[-1]
    x2 = x.reshape(-1, dim)
    rows = x2.shape[0]
    g2 = jnp.asarray(gamma, jnp.float32).reshape(1, dim)
    b2 = jnp.asarray(beta, jnp.float32).reshape(1, dim)

    tm = _row_tile(rows, _LN_MAX_ROWS)
    grid = (pl.cdiv(rows, tm),)
    xb = x2.dtype.itemsize
    footprint = 2 * tm * dim * xb * 2 + 4 * dim * 4  # in+out double-buffered

    out = pl.pallas_call(
        _layernorm_kernel,
        out_shape=jax.ShapeDtypeStruct((rows, dim), x.dtype),
        grid=grid,
        in_specs=[
            pl.BlockSpec((tm, dim), lambda i: (i, 0)),
            pl.BlockSpec((1, dim), lambda i: (0, 0)),
            pl.BlockSpec((1, dim), lambda i: (0, 0)),
        ],
        out_specs=pl.BlockSpec((tm, dim), lambda i: (i, 0)),
        compiler_params=_compiler_params(("parallel",), footprint),
    )(x2, g2, b2)
    return out.reshape(orig_shape)


def _fused_call(resident_kernel, tiled_kernel, xs, gamma2, beta2, w, bias2,
                out_dtype):
    """LN(+LN) prologue fused with x @ w + bias in a single pallas_call."""
    dim, dout = w.shape
    rows = xs[0].shape[0]
    n_x = len(xs)
    x_bytes = xs[0].dtype.itemsize
    o_bytes = jnp.dtype(out_dtype).itemsize
    w_itemsize = w.dtype.itemsize
    tm = _row_tile(rows, _MM_MAX_ROWS)
    const_bytes = 2 * (2 * dim * 4)  # gamma + beta (tiny, double-buffered)

    if dim * dout * w_itemsize <= _RESIDENT_W_BYTES:
        # Whole weight resident: 1-D grid over row tiles, constant W/bias index
        # => DMA'd from HBM exactly once for the whole kernel.
        grid = (pl.cdiv(rows, tm),)
        footprint = (2 * n_x * tm * dim * x_bytes
                     + 2 * tm * dout * o_bytes
                     + 2 * dim * dout * w_itemsize
                     + 2 * dout * 4
                     + const_bytes)
        x_spec = pl.BlockSpec((tm, dim), lambda i: (i, 0))
        in_specs = [x_spec] * n_x + [
            pl.BlockSpec((1, dim), lambda i: (0, 0)),
            pl.BlockSpec((1, dim), lambda i: (0, 0)),
            pl.BlockSpec((dim, dout), lambda i: (0, 0)),
            pl.BlockSpec((1, dout), lambda i: (0, 0)),
        ]
        return pl.pallas_call(
            resident_kernel,
            out_shape=jax.ShapeDtypeStruct((rows, dout), out_dtype),
            grid=grid,
            in_specs=in_specs,
            out_specs=pl.BlockSpec((tm, dout), lambda i: (i, 0)),
            compiler_params=_compiler_params(("parallel",), footprint),
        )(*xs, gamma2, beta2, w, bias2)

    # Large dout: tile output columns; LN cached in a bf16 VMEM scratch at
    # j == 0 and reused across the (arbitrary) column axis.
    tn = _col_tile(dout)
    grid = (pl.cdiv(rows, tm), pl.cdiv(dout, tn))
    footprint = (2 * n_x * tm * dim * x_bytes
                 + 2 * tm * tn * o_bytes
                 + 2 * dim * tn * w_itemsize
                 + 2 * tn * 4
                 + tm * dim * w_itemsize        # LN scratch (single buffer)
                 + const_bytes)
    x_spec = pl.BlockSpec((tm, dim), lambda i, j: (i, 0))
    in_specs = [x_spec] * n_x + [
        pl.BlockSpec((1, dim), lambda i, j: (0, 0)),
        pl.BlockSpec((1, dim), lambda i, j: (0, 0)),
        pl.BlockSpec((dim, tn), lambda i, j: (0, j)),
        pl.BlockSpec((1, tn), lambda i, j: (0, j)),
    ]
    return pl.pallas_call(
        tiled_kernel,
        out_shape=jax.ShapeDtypeStruct((rows, dout), out_dtype),
        grid=grid,
        in_specs=in_specs,
        out_specs=pl.BlockSpec((tm, tn), lambda i, j: (i, j)),
        scratch_shapes=[pltpu.VMEM((tm, dim), w.dtype)],
        # Column axis reuses the LN scratch written at j == 0 -> "arbitrary";
        # row axis is independent -> "parallel" (megacore on v7x).
        compiler_params=_compiler_params(("parallel", "arbitrary"), footprint),
    )(*xs, gamma2, beta2, w, bias2)


def fused_prenorm_linear(x, gamma2, beta2, w, bias2):
    """Linear(LayerNorm(x)) in ONE pallas_call (no HBM round trip for LN)."""
    orig_shape = x.shape
    dim = orig_shape[-1]
    dout = w.shape[1]
    out = _fused_call(_fused_ln_linear_resident_kernel,
                      _fused_ln_linear_tiled_kernel,
                      [x.reshape(-1, dim)], gamma2, beta2, w, bias2, x.dtype)
    return out.reshape(orig_shape[:-1] + (dout,))


def fused_prenorm_linear2(x_a, x_b, gamma2, beta2, w, bias2):
    """Linear(LN(x_a)) + Linear(LN(x_b)) in ONE pallas_call."""
    orig_shape = x_a.shape
    dim = orig_shape[-1]
    dout = w.shape[1]
    out = _fused_call(_fused_ln2_linear_resident_kernel,
                      _fused_ln2_linear_tiled_kernel,
                      [x_a.reshape(-1, dim), x_b.reshape(-1, dim)],
                      gamma2, beta2, w, bias2, x_a.dtype)
    return out.reshape(orig_shape[:-1] + (dout,))


def linear(x, w, bias):
    """Tiled Pallas linear (x @ w + bias) used by the generic-fn fallback.

    `w` is used in the dtype it is passed in (store it bf16 once, as
    PallasLinear does) — no per-call full-weight converts here.
    """
    orig_shape = x.shape
    din = orig_shape[-1]
    dout = w.shape[1]
    x2 = x.reshape(-1, din)
    rows = x2.shape[0]
    bias2 = jnp.asarray(bias, jnp.float32).reshape(1, dout)

    tm = _row_tile(rows, _MM_MAX_ROWS)
    tn = _col_tile(dout)
    grid = (pl.cdiv(rows, tm), pl.cdiv(dout, tn))
    # TODO(synk): add a K (din) grid axis + f32 accumulator scratch for very
    # large input dims; din == LayerNorm dim here and fits VMEM comfortably.
    footprint = (2 * tm * din * x2.dtype.itemsize
                 + 2 * din * tn * w.dtype.itemsize
                 + 2 * tn * 4
                 + 2 * tm * tn * x.dtype.itemsize)

    out = pl.pallas_call(
        _linear_kernel,
        out_shape=jax.ShapeDtypeStruct((rows, dout), x.dtype),
        grid=grid,
        in_specs=[
            pl.BlockSpec((tm, din), lambda i, j: (i, 0)),
            pl.BlockSpec((din, tn), lambda i, j: (0, j)),
            pl.BlockSpec((1, tn), lambda i, j: (0, j)),
        ],
        out_specs=pl.BlockSpec((tm, tn), lambda i, j: (i, j)),
        compiler_params=_compiler_params(("parallel", "parallel"), footprint),
    )(x2, w, bias2)
    return out.reshape(orig_shape[:-1] + (dout,))


# ---------------------------------------------------------------------------
# Module equivalents
# ---------------------------------------------------------------------------
class PallasLinear:
    """Linear(dim, dim) wrapped `fn`. Parameters stored ONCE in kernel-feed
    dtype (bf16 weight for the MXU, f32 row-vector bias)."""

    def __init__(self, w, b):
        self.w = jnp.asarray(w, jnp.bfloat16)            # (din, dout) bf16
        self.b = jnp.asarray(b, jnp.float32).reshape(1, -1)  # (1, dout) f32

    def __call__(self, a, b=None):
        y = linear(a, self.w, self.b)
        if b is not None:
            y = y + linear(b, self.w, self.b)
        return y


class PreNorm:
    """JAX/Pallas equivalent of the PyTorch PreNorm module."""

    def __init__(self, dim, fn):
        # nn.LayerNorm(dim) default init: weight = 1, bias = 0.
        # Stored pre-reshaped/pre-cast so wrappers never convert per call.
        self.gamma = jnp.ones((1, dim), jnp.float32)
        self.beta = jnp.zeros((1, dim), jnp.float32)
        self.fn = fn

    def __call__(self, x_A, x_B, **kwargs):
        if isinstance(self.fn, PallasLinear) and not kwargs:
            # Fused LN + Linear path: one pallas_call per branch.
            if x_B is None:
                return fused_prenorm_linear(x_A, self.gamma, self.beta,
                                            self.fn.w, self.fn.b)
            return fused_prenorm_linear2(x_A, x_B, self.gamma, self.beta,
                                         self.fn.w, self.fn.b)
        # Generic wrapped fn: standalone Pallas LayerNorm, then fn.
        if x_B is None:
            return self.fn(layernorm(x_A, self.gamma, self.beta), **kwargs)
        return self.fn(layernorm(x_A, self.gamma, self.beta),
                       layernorm(x_B, self.gamma, self.beta), **kwargs)


if __name__ == "__main__":
    # Small shapes consistent with the module: (batch, seq, dim).
    B, N, D = 2, 8, 32
    key = jax.random.PRNGKey(0)
    k_a, k_b, k_w, k_bias = jax.random.split(key, 4)

    x_A = jax.random.normal(k_a, (B, N, D), dtype=jnp.float32)
    x_B = jax.random.normal(k_b, (B, N, D), dtype=jnp.float32)

    # Deterministic synthetic wrapped `fn`: Linear(dim, dim); for two inputs it
    # sums the two projections (bias contributes twice — matches the reference).
    w_fn = jax.random.normal(k_w, (D, D), dtype=jnp.float32) * 0.02
    b_fn = jax.random.normal(k_bias, (D,), dtype=jnp.float32) * 0.1

    prenorm = PreNorm(D, PallasLinear(w_fn, b_fn))

    # Fused path, branch 1: x_B is None.
    out1 = prenorm(x_A, None)
    # Fused path, branch 2: both inputs present.
    out2 = prenorm(x_A, x_B)

    # Generic-fn fallback path (standalone Pallas LN + tiled Pallas linear).
    w_bf16 = w_fn.astype(jnp.bfloat16)          # stored once, not per call
    b_row = b_fn.reshape(1, D).astype(jnp.float32)
    generic_fn = lambda a, b=None: (linear(a, w_bf16, b_row) if b is None
                                    else linear(a, w_bf16, b_row)
                                    + linear(b, w_bf16, b_row))
    prenorm_generic = PreNorm(D, generic_fn)
    out3 = prenorm_generic(x_A, None)

    out1 = jax.block_until_ready(out1)
    out2 = jax.block_until_ready(out2)
    out3 = jax.block_until_ready(out3)

    # Cross-check against a pure-JAX f32 reference.  The Pallas kernels feed
    # the MXU bf16 operands (f32 accumulation), so tolerances are loosened
    # relative to an exact-f32 comparison.
    def ln_ref(x):
        m = jnp.mean(x, axis=-1, keepdims=True)
        v = jnp.mean((x - m) ** 2, axis=-1, keepdims=True)
        return (x - m) * jax.lax.rsqrt(v + LN_EPS)

    ref1 = jnp.einsum("bnd,de->bne", ln_ref(x_A), w_fn) + b_fn
    ref2 = ref1 + jnp.einsum("bnd,de->bne", ln_ref(x_B), w_fn) + b_fn

    assert out1.shape == (B, N, D) and out2.shape == (B, N, D) and out3.shape == (B, N, D)
    assert jnp.allclose(out1, ref1, atol=2e-2, rtol=2e-2)
    assert jnp.allclose(out2, ref2, atol=2e-2, rtol=2e-2)
    assert jnp.allclose(out3, ref1, atol=2e-2, rtol=2e-2)

    print("KERNEL_OK")
</pallas_src>

<mosaic_0001>
module attributes {stable_mosaic.version = 11 : i64} {
  func.func @_fused_ln_linear_resident_kernel(%arg0: i32, %arg1: memref<16x32xf32, #tpu.memory_space<vmem>>, %arg2: memref<1x32xf32, #tpu.memory_space<vmem>>, %arg3: memref<1x32xf32, #tpu.memory_space<vmem>>, %arg4: memref<32x32xbf16, #tpu.memory_space<vmem>>, %arg5: memref<1x32xf32, #tpu.memory_space<vmem>>, %arg6: memref<16x32xf32, #tpu.memory_space<vmem>>) attributes {dimension_semantics = [#tpu.dimension_semantics<parallel>], iteration_bounds = array<i64: 1>, scalar_prefetch = 0 : i64, scratch_operands = 0 : i64, tpu.core_type = #tpu.core_type<tc>, window_params = [{transform_indices = @transform_0, window_bounds = array<i64: 16, 32>}, {pipeline_mode = #tpu.pipeline_mode<synchronous>, transform_indices = @transform_1, window_bounds = array<i64: 1, 32>}, {pipeline_mode = #tpu.pipeline_mode<synchronous>, transform_indices = @transform_2, window_bounds = array<i64: 1, 32>}, {pipeline_mode = #tpu.pipeline_mode<synchronous>, transform_indices = @transform_3, window_bounds = array<i64: 32, 32>}, {pipeline_mode = #tpu.pipeline_mode<synchronous>, transform_indices = @transform_4, window_bounds = array<i64: 1, 32>}, {transform_indices = @transform_5, window_bounds = array<i64: 16, 32>}]} {
    %c0 = arith.constant 0 : index
    %c0_0 = arith.constant 0 : index
    %0 = vector.load %arg1[%c0, %c0_0] : memref<16x32xf32, #tpu.memory_space<vmem>>, vector<16x32xf32>
    %c0_1 = arith.constant 0 : index
    %c0_2 = arith.constant 0 : index
    %1 = vector.load %arg2[%c0_1, %c0_2] : memref<1x32xf32, #tpu.memory_space<vmem>>, vector<1x32xf32>
    %c0_3 = arith.constant 0 : index
    %c0_4 = arith.constant 0 : index
    %2 = vector.load %arg3[%c0_3, %c0_4] : memref<1x32xf32, #tpu.memory_space<vmem>>, vector<1x32xf32>
    %cst = arith.constant dense<0.000000e+00> : vector<16xf32>
    %3 = vector.multi_reduction <add>, %0, %cst [1] : vector<16x32xf32> to vector<16xf32>
    %4 = vector.shape_cast %3 : vector<16xf32> to vector<16x1xf32>
    %cst_5 = arith.constant 3.200000e+01 : f32
    %5 = vector.broadcast %cst_5 : f32 to vector<16x1xf32>
    %6 = arith.divf %4, %5 : vector<16x1xf32>
    %7 = vector.broadcast %6 : vector<16x1xf32> to vector<16x32xf32>
    %8 = arith.subf %0, %7 : vector<16x32xf32>
    %9 = arith.mulf %8, %8 : vector<16x32xf32>
    %cst_6 = arith.constant dense<0.000000e+00> : vector<16xf32>
    %10 = vector.multi_reduction <add>, %9, %cst_6 [1] : vector<16x32xf32> to vector<16xf32>
    %11 = vector.shape_cast %10 : vector<16xf32> to vector<16x1xf32>
    %cst_7 = arith.constant 3.200000e+01 : f32
    %12 = vector.broadcast %cst_7 : f32 to vector<16x1xf32>
    %13 = arith.divf %11, %12 : vector<16x1xf32>
    %cst_8 = arith.constant 9.99999974E-6 : f32
    %14 = vector.broadcast %cst_8 : f32 to vector<16x1xf32>
    %15 = arith.addf %13, %14 : vector<16x1xf32>
    %16 = math.rsqrt %15 : vector<16x1xf32>
    %17 = vector.broadcast %16 : vector<16x1xf32> to vector<16x32xf32>
    %18 = arith.mulf %8, %17 : vector<16x32xf32>
    %19 = vector.broadcast %1 : vector<1x32xf32> to vector<16x32xf32>
    %20 = arith.mulf %18, %19 : vector<16x32xf32>
    %21 = vector.broadcast %2 : vector<1x32xf32> to vector<16x32xf32>
    %22 = arith.addf %20, %21 : vector<16x32xf32>
    %23 = arith.truncf %22 : vector<16x32xf32> to vector<16x32xbf16>
    %c0_9 = arith.constant 0 : index
    %c0_10 = arith.constant 0 : index
    %24 = vector.load %arg4[%c0_9, %c0_10] : memref<32x32xbf16, #tpu.memory_space<vmem>>, vector<32x32xbf16>
    %cst_11 = arith.constant dense<0.000000e+00> : vector<16x32xf32>
    %25 = tpu.matmul %23, %24, %cst_11 {dimension_numbers = #tpu.dot_dimension_numbers<[1], [0], [0], [1], [0, 0, 1, 1], [], []>} : vector<16x32xbf16>, vector<32x32xbf16>, vector<16x32xf32> -> vector<16x32xf32>
    %c0_12 = arith.constant 0 : index
    %c0_13 = arith.constant 0 : index
    %26 = vector.load %arg5[%c0_12, %c0_13] : memref<1x32xf32, #tpu.memory_space<vmem>>, vector<1x32xf32>
    %27 = vector.broadcast %26 : vector<1x32xf32> to vector<16x32xf32>
    %28 = arith.addf %25, %27 : vector<16x32xf32>
    %c0_14 = arith.constant 0 : index
    %c0_15 = arith.constant 0 : index
    %29 = vector.load %arg6[%c0_14, %c0_15] : memref<16x32xf32, #tpu.memory_space<vmem>>, vector<16x32xf32>
    tpu.vector_store %arg6[%c0_14, %c0_15], %28 {strides = array<i32>} : memref<16x32xf32, #tpu.memory_space<vmem>>, vector<16x32xf32>,
    return
  }
  func.func @transform_0(%arg0: i32) -> (i32, i32) {
    %c0_i32 = arith.constant 0 : i32
    %c0_i32_0 = arith.constant 0 : i32
    return %arg0, %c0_i32 : i32, i32
  }
  func.func @transform_1(%arg0: i32) -> (i32, i32) {
    %c0_i32 = arith.constant 0 : i32
    %c0_i32_0 = arith.constant 0 : i32
    %c0_i32_1 = arith.constant 0 : i32
    return %c0_i32, %c0_i32_0 : i32, i32
  }
  func.func @transform_2(%arg0: i32) -> (i32, i32) {
    %c0_i32 = arith.constant 0 : i32
    %c0_i32_0 = arith.constant 0 : i32
    %c0_i32_1 = arith.constant 0 : i32
    return %c0_i32, %c0_i32_0 : i32, i32
  }
  func.func @transform_3(%arg0: i32) -> (i32, i32) {
    %c0_i32 = arith.constant 0 : i32
    %c0_i32_0 = arith.constant 0 : i32
    %c0_i32_1 = arith.constant 0 : i32
    return %c0_i32, %c0_i32_0 : i32, i32
  }
  func.func @transform_4(%arg0: i32) -> (i32, i32) {
    %c0_i32 = arith.constant 0 : i32
    %c0_i32_0 = arith.constant 0 : i32
    %c0_i32_1 = arith.constant 0 : i32
    return %c0_i32, %c0_i32_0 : i32, i32
  }
  func.func @transform_5(%arg0: i32) -> (i32, i32) {
    %c0_i32 = arith.constant 0 : i32
    %c0_i32_0 = arith.constant 0 : i32
    return %arg0, %c0_i32 : i32, i32
  }
}

</mosaic_0001>

<llo_original>
// kernel: tpu_custom_call.1
$region0: #{tpu_custom_call.1}
  #allocation0 [shape = 'u32[]', space=smem, size = 0x4, offset = 0x4, fixed_abs, tag = 'smem constant byte address 0x4 - core index']
  #allocation1 [shape = 'u32[144,128]{1,0:T(1,128)}', space=vmem, size = 0x12000, scoped, tag = 'internal scratch']
  %s0 = inlined_call_operand.hbm [shape: f32[16,32], index: 0, kind: input, shape index: {}]
  %s1 = inlined_call_operand.vmem [shape: f32[1,32], index: 1, kind: input, shape index: {}]
  %s2 = inlined_call_operand.vmem [shape: f32[1,32], index: 2, kind: input, shape index: {}]
  %s3 = inlined_call_operand.hbm [shape: bf16[32,32], index: 3, kind: input, shape index: {}]
  %s4 = inlined_call_operand.vmem [shape: f32[1,32], index: 4, kind: input, shape index: {}]
  %s5 = inlined_call_operand.hbm [shape: f32[16,32], index: 5, kind: output, shape index: {}]
  %s6 = sld [smem:[#allocation0]]
  $region38: #{tpu_custom_call.1} parent=0
    _
  %s8 = ssub.s32 1, %s6
  %s9 = scalar_select 0, %s8, %s6
  $region1: #{tpu_custom_call.1} parent=0
    #allocation2 [shape = 'u8[8192]{0}', space=vmem, size = 0x2000, scoped, tag = 'input window, operand 0, single buffered']
    #allocation3 [shape = 's32[1]{0}', space=sflag, size = 0x4, scoped, tag = 'scoped memory for tpu_custom_call.1']
    #allocation4 [shape = 's32[1]{0}', space=sflag, size = 0x4, scoped, tag = 'scoped memory for tpu_custom_call.1']
    #allocation5 [shape = 'u8[8192]{0}', space=vmem, size = 0x2000, scoped, tag = 'input window, operand 3, single buffered']
    #allocation6 [shape = 's32[1]{0}', space=sflag, size = 0x4, scoped, tag = 'scoped memory for tpu_custom_call.1']
    #allocation7 [shape = 'u8[8192]{0}', space=vmem, size = 0x2000, scoped, tag = 'output window, operand 0, single buffered']
    %10 = vsyncpa [#allocation3], 0
    %11 = vsyncpa [#allocation6], 0
    %12 = vsyncpa [#allocation4], 0
    // Predicated region
    $region2: #{tpu_custom_call.1} parent=1 // pred_check
      _
    $region3: #{tpu_custom_call.1} parent=1 // pred_check_branch
      %14 = sbr.rel (0) target = $region5
    $region4: #{tpu_custom_call.1} parent=1 // pred_region
      %s16 = ssub.s32 256, 256
      %17 = vsyncadd [#allocation3], %s16
      %s18 = sshll.u32 [#allocation2], 4
      %s19 = int_to_ptr.vmem [resolvable:$true] %s18
      %24 = dma.hbm_to_vmem [thread:$0]  %s0, 256, %s19, [#allocation3], 128, 128, 8
    $region5: #{tpu_custom_call.1} parent=1 // pred_fallthru
      _
    // Predicated region
    $region6: #{tpu_custom_call.1} parent=1 // pred_check
      _
    $region7: #{tpu_custom_call.1} parent=1 // pred_check_branch
      %26 = sbr.rel (0) target = $region9
    $region8: #{tpu_custom_call.1} parent=1 // pred_region
      _
    $region9: #{tpu_custom_call.1} parent=1 // pred_fallthru
      _
    // Predicated region
    $region10: #{tpu_custom_call.1} parent=1 // pred_check
      _
    $region11: #{tpu_custom_call.1} parent=1 // pred_check_branch
      %28 = sbr.rel (0) target = $region13
    $region12: #{tpu_custom_call.1} parent=1 // pred_region
      _
    $region13: #{tpu_custom_call.1} parent=1 // pred_fallthru
      _
    // Predicated region
    $region14: #{tpu_custom_call.1} parent=1 // pred_check
      _
    $region15: #{tpu_custom_call.1} parent=1 // pred_check_branch
      %30 = sbr.rel (0) target = $region17
    $region16: #{tpu_custom_call.1} parent=1 // pred_region
      %s32 = ssub.s32 256, 256
      %33 = vsyncadd [#allocation6], %s32
      %s34 = sshll.u32 [#allocation5], 4
      %s35 = int_to_ptr.vmem [resolvable:$true] %s34
      %40 = dma.hbm_to_vmem [thread:$0]  %s3, 256, %s35, [#allocation6], 64, 64, 4
    $region17: #{tpu_custom_call.1} parent=1 // pred_fallthru
      _
    // Predicated region
    $region18: #{tpu_custom_call.1} parent=1 // pred_check
      _
    $region19: #{tpu_custom_call.1} parent=1 // pred_check_branch
      %42 = sbr.rel (0) target = $region21
    $region20: #{tpu_custom_call.1} parent=1 // pred_region
      _
    $region21: #{tpu_custom_call.1} parent=1 // pred_fallthru
      _
    // Predicated region
    $region22: #{tpu_custom_call.1} parent=1 // pred_check
      _
    $region23: #{tpu_custom_call.1} parent=1 // pred_check_branch
      %44 = sbr.rel (0) target = $region25
    $region24: #{tpu_custom_call.1} parent=1 // pred_region
      %45 = dma.done [#allocation3], 256
    $region25: #{tpu_custom_call.1} parent=1 // pred_fallthru
      _
    // Predicated region
    $region26: #{tpu_custom_call.1} parent=1 // pred_check
      _
    $region27: #{tpu_custom_call.1} parent=1 // pred_check_branch
      %47 = sbr.rel (0) target = $region29
    $region28: #{tpu_custom_call.1} parent=1 // pred_region
      %48 = dma.done [#allocation6], 256
    $region29: #{tpu_custom_call.1} parent=1 // pred_fallthru
      _
    %v50 = vld [vmem:[#allocation2] sm:$0xff]
    %v51 = vld [vmem:[#allocation2 + $0x8] sm:$0xff]
    %v52 = vld [vmem:[%s1] sm:$0x1]
    %v53 = vld [vmem:[%s2] sm:$0x1]
    %vm54 = vcmask 261120
    %v55 = vsel %vm54, %v50, 0.0
    %56 = vadd.xlane.f32.xlu0 %v55
    %v57 = vpop.xlane.xlu0 %56
    %v58 = vsel %vm54, %v51, 0.0
    %59 = vadd.xlane.f32.xlu0 %v58
    %v60 = vpop.xlane.xlu0 %59
    %v61 = vrcp.pop 32.0
    %v62 = vmul.f32 %v57, %v61
    %v63 = vmul.f32 %v60, %v61
    %v64 = vsub.f32 %v50, %v62
    %v65 = vsub.f32 %v51, %v63
    %v66 = vmul.f32 %v64, %v64
    %v67 = vmul.f32 %v65, %v65
    %v68 = vsel %vm54, %v66, 0.0
    %69 = vadd.xlane.f32.xlu0 %v68
    %v70 = vpop.xlane.xlu0 %69
    %v71 = vsel %vm54, %v67, 0.0
    %72 = vadd.xlane.f32.xlu0 %v71
    %v73 = vpop.xlane.xlu0 %72
    %v74 = vmul.f32 %v70, %v61
    %v75 = vmul.f32 %v73, %v61
    %v76 = vadd.f32 %v74, 1e-05
    %v77 = vadd.f32 %v75, 1e-05
    %v78 = vrsqrt.pop %v76
    %v79 = vrsqrt.pop %v77
    %v80 = vmul.f32 %v64, %v78
    %v81 = vmul.f32 %v65, %v79
    %v83 = vlaneseq
    %v84 = vshrl.u32 %v83, 7
    %v85 = vsub.s32 0, %v84
    %v86 = vrot.slane %v52, %v85
    %v88 = vmul.f32 %v80, %v86
    %v89 = vmul.f32 %v81, %v86
    %v91 = vlaneseq
    %v92 = vshrl.u32 %v91, 7
    %v93 = vsub.s32 0, %v92
    %v94 = vrot.slane %v53, %v93
    %v96 = vadd.f32 %v88, %v94
    %v97 = vadd.f32 %v89, %v94
    %v98 = vpack.c.bf16 %v97, %v96
    %v99 = vld [vmem:[#allocation5] sm:$0xf]
    %v100 = vld [vmem:[#allocation5 + $0x4] sm:$0xf]
    %v101 = vld [vmem:[#allocation5 + $0x8] sm:$0xf]
    %v102 = vld [vmem:[#allocation5 + $0xc] sm:$0xf]
    %v103 = vld [vmem:[%s4] sm:$0x1]
    %v105 = vlaneseq
    %v106 = vshrl.u32 %v105, 7
    %v107 = vsub.s32 0, %v106
    %v108 = vrot.slane %v103, %v107
    %v114 = vunpack.c.l.b16 %v99
    %v115 = vunpack.c.l.b16 %v100
    %v116 = vunpack.c.l.b16 %v101
    %v117 = vunpack.c.l.b16 %v102
    %v118 = vpack.c.b16 %v115, %v114
    %v119 = vpack.c.b16 %v117, %v116
    %v123 = vsel %vm54, %v98, 0
    %125 = vmatprep.subr.bf16.mxu0 0
    %126 = vmatpush1.bf16.msra.mxu0 0
    %127 = vmatprep.subr.bf16.mxu0 0
    %128 = vmatpush1.bf16.msra.mxu0 0
    %129 = vmatprep.subr.bf16.mxu0 0
    %130 = vmatpush1.bf16.msra.mxu0 0
    %131 = vmatprep.subr.bf16.mxu0 0
    %132 = vmatpush1.bf16.msra.mxu0 0
    %133 = vmatprep.subr.bf16.mxu0 0
    %134 = vmatpush1.bf16.msra.mxu0 0
    %135 = vmatprep.subr.bf16.mxu0 0
    %136 = vmatpush1.bf16.msra.mxu0 0
    %137 = vmatprep.subr.bf16.mxu0 0
    %138 = vmatpush1.bf16.msra.mxu0 %v119
    %139 = vmatprep.subr.bf16.mxu0 0
    %140 = vmatpush1.bf16.msra.mxu0 %v118
    %141 = vmatprep.subr.bf16.mxu0 0
    %142 = vmatpush2.bf16.msra.mxu0 0
    %143 = vmatprep.subr.bf16.mxu0 0
    %144 = vmatpush2.bf16.msra.mxu0 0
    %145 = vmatprep.subr.bf16.mxu0 0
    %146 = vmatpush2.bf16.msra.mxu0 0
    %147 = vmatprep.subr.bf16.mxu0 0
    %148 = vmatpush2.bf16.msra.mxu0 0
    %149 = vmatprep.subr.bf16.mxu0 0
    %150 = vmatpush2.bf16.msra.mxu0 0
    %151 = vmatprep.subr.bf16.mxu0 0
    %152 = vmatpush2.bf16.msra.mxu0 0
    %153 = vmatprep.subr.bf16.mxu0 0
    %154 = vmatpush2.bf16.msra.mxu0 0
    %155 = vmatprep.subr.bf16.mxu0 0
    %156 = vmatpush2.bf16.msra.mxu0 0
    %157 = vmatprep.mubr.bf16.mxu0 0
    %158 = vmatmul.mubr.bf16.gmra.mxu0 %v123
    %v159 = vpop.f32.mrf.mxu0
    %v160 = vadd.f32 %v108, %v159
    %v161 = vpop.f32.mrf.mxu0
    %v162 = vpop.f32.mrf.mxu0
    %v163 = vadd.f32 %v108, %v162
    %v164 = vpop.f32.mrf.mxu0
    %165 = vdwg.mxu0
    %166 = vst.msk [vmem:[#allocation7] sm:$0xff] %vm54, %v160
    %167 = vst.msk [vmem:[#allocation7 + $0x8] sm:$0xff] %vm54, %v163
    // Predicated region
    $region30: #{tpu_custom_call.1} parent=1 // pred_check
      _
    $region31: #{tpu_custom_call.1} parent=1 // pred_check_branch
      %169 = sbr.rel (0) target = $region33
    $region32: #{tpu_custom_call.1} parent=1 // pred_region
      %s171 = ssub.s32 256, 256
      %172 = vsyncadd [#allocation4], %s171
      %s173 = sshll.u32 [#allocation7], 4
      %s174 = int_to_ptr.vmem [resolvable:$true] %s173
      %179 = dma.vmem_to_hbm [thread:$0]  %s174, 256, %s5, [#allocation4], 128, 128, 8
    $region33: #{tpu_custom_call.1} parent=1 // pred_fallthru
      _
    // Predicated region
    $region34: #{tpu_custom_call.1} parent=1 // pred_check
      _
    $region35: #{tpu_custom_call.1} parent=1 // pred_check_branch
      %181 = sbr.rel (0) target = $region37
    $region36: #{tpu_custom_call.1} parent=1 // pred_region
      %182 = dma.done [#allocation4], 256
    $region37: #{tpu_custom_call.1} parent=1 // pred_fallthru
      _
    %183 = vsyncpa [#allocation3], 1
    %184 = vsyncpa [#allocation6], 1
    %185 = vsyncpa [#allocation4], 1

</llo_original>
